<compile_context>
chip_gen: v6e
topology: v6e:2x2x1
jax: 0.10.0
libtpu: 0.0.40
codegen_flags: <defaults>
</compile_context>

<pallas_src>
import jax
import jax.numpy as jnp
from jax.experimental import pallas as pl
from jax.experimental.pallas import tpu as pltpu

H1 = 128        # fc1 output width
H2 = 64         # fc2 logical output width
H2_PAD = 128    # fc2 padded width (full lane width; zero pad is exact)
OUT = 3         # fc3 logical output width
OUT_PAD = 8     # fc3 padded width: full-array last dim (legal block), 16x less writeback than 128


def mlp_kernel(x_ref, w1_ref, b1_ref, w2_ref, b2_ref, w3_ref, b3_ref, o_ref):
    # Whole-network fusion on one batch tile; weights/biases are VMEM-resident across grid
    # steps (constant index_map), activations never touch HBM.
    x = x_ref[...]                                                         # bf16 (tb, IN)
    h1 = jnp.dot(x, w1_ref[...], preferred_element_type=jnp.float32) + b1_ref[...]
    h1 = jnp.maximum(h1, 0.0)
    h2 = jnp.dot(h1.astype(jnp.bfloat16), w2_ref[...],
                 preferred_element_type=jnp.float32) + b2_ref[...]
    h2 = jnp.maximum(h2, 0.0)
    out = jnp.dot(h2.astype(jnp.bfloat16), w3_ref[...],
                  preferred_element_type=jnp.float32) + b3_ref[...]
    o_ref[...] = out.astype(o_ref.dtype)


def pad_params(params):
    """Zero-pad fc2/fc3 to kernel widths and cast weights to bf16 (once, off the hot path)."""
    w1, b1, w2, b2, w3, b3 = params
    # Robust to 1-D biases (e.g. a PyTorch export): always make them (1, fan_out) f32.
    b1 = jnp.asarray(b1).reshape(1, -1).astype(jnp.float32)
    b2 = jnp.asarray(b2).reshape(1, -1).astype(jnp.float32)
    b3 = jnp.asarray(b3).reshape(1, -1).astype(jnp.float32)
    assert w1.shape[1] == H1 and w2.shape == (H1, H2) and w3.shape == (H2, OUT)
    w2p = jnp.pad(w2, ((0, 0), (0, H2_PAD - H2)))
    b2p = jnp.pad(b2, ((0, 0), (0, H2_PAD - H2)))
    w3p = jnp.pad(w3, ((0, H2_PAD - H2), (0, OUT_PAD - OUT)))
    b3p = jnp.pad(b3, ((0, 0), (0, OUT_PAD - OUT)))
    return (w1.astype(jnp.bfloat16), b1,
            w2p.astype(jnp.bfloat16), b2p,
            w3p.astype(jnp.bfloat16), b3p)


def _pick_batch_tile(B, tile_b):
    # Small batches: one grid step (launch cost dominates; extra steps are pure overhead).
    if B <= 512:
        return B, 1
    # Large batches: big tiles amortize the ~0.35us/step overhead, but always >= 2 tiles so
    # the "parallel" axis can shard across v7x's 2 TCs. Tiles are multiples of 256 rows
    # (sublane/MXU friendly for both f32 and bf16).
    tb = min(tile_b, pl.cdiv(B, 2))
    tb = max(256, (tb // 256) * 256)
    return tb, pl.cdiv(B, tb)


def credit_score_forward(x, padded_params, *, tile_b=4096):
    """x: (B, input_size) float. padded_params: output of pad_params(). Returns (B, 3) f32."""
    w1, b1, w2p, b2p, w3p, b3p = padded_params
    B, IN = x.shape
    x = x.astype(jnp.bfloat16)

    tb, n_tiles = _pick_batch_tile(B, tile_b)
    Bp = n_tiles * tb
    if Bp != B:
        # Zero-padded batch rows compute garbage (relu(bias)...) but are sliced off below.
        x = jnp.pad(x, ((0, Bp - B), (0, 0)))

    flops = 2 * Bp * (IN * H1 + H1 * H2_PAD + H2_PAD * OUT_PAD)
    bytes_accessed = (
        2 * Bp * IN                                          # bf16 x in
        + 2 * (IN * H1 + H1 * H2_PAD + H2_PAD * OUT_PAD)     # bf16 weights (resident)
        + 4 * (H1 + H2_PAD + OUT_PAD)                        # f32 biases
        + 4 * Bp * OUT_PAD                                   # f32 out slab
    )

    def resident(shape):
        # Constant index_map -> block DMA'd into VMEM once and reused every grid step.
        return pl.BlockSpec(shape, lambda i: (0, 0))

    out_padded = pl.pallas_call(
        mlp_kernel,
        out_shape=jax.ShapeDtypeStruct((Bp, OUT_PAD), jnp.float32),
        grid=(n_tiles,),
        in_specs=[
            pl.BlockSpec((tb, IN), lambda i: (i, 0)),   # x: tiled over batch, double-buffered
            resident((IN, H1)),
            resident((1, H1)),
            resident((H1, H2_PAD)),
            resident((1, H2_PAD)),
            resident((H2_PAD, OUT_PAD)),
            resident((1, OUT_PAD)),
        ],
        out_specs=pl.BlockSpec((tb, OUT_PAD), lambda i: (i, 0)),
        compiler_params=pltpu.CompilerParams(
            dimension_semantics=("parallel",),        # batch tiles shard across TCs on v7x
            vmem_limit_bytes=32 * 1024 * 1024,        # tb=4096 exceeds v5e's 16MiB default scope
        ),
        cost_estimate=pl.CostEstimate(
            flops=flops, transcendentals=0, bytes_accessed=bytes_accessed
        ),
    )(x, w1, b1, w2p, b2p, w3p, b3p)

    # Slice the small (Bp, 8) slab back to the logical (B, 3) output.
    return out_padded[:B, :OUT]


def init_params(key, input_size):
    # Deterministic init mimicking nn.Linear's uniform(-1/sqrt(fan_in), 1/sqrt(fan_in)).
    def linear(key, fan_in, fan_out):
        kw, kb = jax.random.split(key)
        bound = 1.0 / jnp.sqrt(fan_in)
        w = jax.random.uniform(kw, (fan_in, fan_out), jnp.float32, -bound, bound)
        b = jax.random.uniform(kb, (1, fan_out), jnp.float32, -bound, bound)
        return w, b

    k1, k2, k3 = jax.random.split(key, 3)
    w1, b1 = linear(k1, input_size, H1)
    w2, b2 = linear(k2, H1, H2)
    w3, b3 = linear(k3, H2, OUT)
    return (w1, b1, w2, b2, w3, b3)


if __name__ == "__main__":
    key = jax.random.PRNGKey(0)
    kx, kp = jax.random.split(key)

    batch, input_size = 8, 32
    x = jax.random.normal(kx, (batch, input_size), jnp.float32)
    params = init_params(kp, input_size)
    padded = pad_params(params)

    out = jax.block_until_ready(credit_score_forward(x, padded))
    assert out.shape == (batch, OUT)

    w1, b1, w2, b2, w3, b3 = params

    # Tight reference: same bf16 rounding of matmul operands as the kernel, f32 accumulation.
    def ref_fwd(xi):
        f = lambda a: a.astype(jnp.bfloat16).astype(jnp.float32)
        h1 = jnp.maximum(f(xi) @ f(w1) + b1, 0.0)
        h2 = jnp.maximum(f(h1) @ f(w2) + b2, 0.0)
        return f(h2) @ f(w3) + b3

    ref = ref_fwd(x)
    assert jnp.allclose(out, ref, atol=5e-3, rtol=5e-3), float(jnp.max(jnp.abs(out - ref)))

    # Loose sanity check vs. pure-f32 PyTorch-equivalent math (bf16 operands -> ~1% error).
    h1f = jnp.maximum(x @ w1 + b1, 0.0)
    h2f = jnp.maximum(h1f @ w2 + b2, 0.0)
    ref32 = h2f @ w3 + b3
    assert jnp.allclose(out, ref32, atol=5e-2, rtol=5e-2)

    # Exercise the multi-tile (large-batch) path: non-multiple of the tile -> batch padding too.
    big_b = 600
    xb = jax.random.normal(kx, (big_b, input_size), jnp.float32)
    out_big = jax.block_until_ready(credit_score_forward(xb, padded))
    refb = ref_fwd(xb)
    assert out_big.shape == (big_b, OUT)
    assert jnp.allclose(out_big, refb, atol=5e-3, rtol=5e-3), float(jnp.max(jnp.abs(out_big - refb)))

    print("KERNEL_OK")
</pallas_src>

<mosaic_0001>
module attributes {stable_mosaic.version = 11 : i64} {
  func.func @mlp_kernel(%arg0: i32, %arg1: memref<8x32xbf16, #tpu.memory_space<vmem>>, %arg2: memref<32x128xbf16, #tpu.memory_space<vmem>>, %arg3: memref<1x128xf32, #tpu.memory_space<vmem>>, %arg4: memref<128x128xbf16, #tpu.memory_space<vmem>>, %arg5: memref<1x128xf32, #tpu.memory_space<vmem>>, %arg6: memref<128x8xbf16, #tpu.memory_space<vmem>>, %arg7: memref<1x8xf32, #tpu.memory_space<vmem>>, %arg8: memref<8x8xf32, #tpu.memory_space<vmem>>) attributes {dimension_semantics = [#tpu.dimension_semantics<parallel>], iteration_bounds = array<i64: 1>, scalar_prefetch = 0 : i64, scratch_operands = 0 : i64, tpu.core_type = #tpu.core_type<tc>, window_params = [{transform_indices = @transform_0, window_bounds = array<i64: 8, 32>}, {pipeline_mode = #tpu.pipeline_mode<synchronous>, transform_indices = @transform_1, window_bounds = array<i64: 32, 128>}, {pipeline_mode = #tpu.pipeline_mode<synchronous>, transform_indices = @transform_2, window_bounds = array<i64: 1, 128>}, {pipeline_mode = #tpu.pipeline_mode<synchronous>, transform_indices = @transform_3, window_bounds = array<i64: 128, 128>}, {pipeline_mode = #tpu.pipeline_mode<synchronous>, transform_indices = @transform_4, window_bounds = array<i64: 1, 128>}, {pipeline_mode = #tpu.pipeline_mode<synchronous>, transform_indices = @transform_5, window_bounds = array<i64: 128, 8>}, {pipeline_mode = #tpu.pipeline_mode<synchronous>, transform_indices = @transform_6, window_bounds = array<i64: 1, 8>}, {transform_indices = @transform_7, window_bounds = array<i64: 8, 8>}]} {
    %c0 = arith.constant 0 : index
    %c0_0 = arith.constant 0 : index
    %0 = vector.load %arg1[%c0, %c0_0] : memref<8x32xbf16, #tpu.memory_space<vmem>>, vector<8x32xbf16>
    %c0_1 = arith.constant 0 : index
    %c0_2 = arith.constant 0 : index
    %1 = vector.load %arg2[%c0_1, %c0_2] : memref<32x128xbf16, #tpu.memory_space<vmem>>, vector<32x128xbf16>
    %cst = arith.constant dense<0.000000e+00> : vector<8x128xf32>
    %2 = tpu.matmul %0, %1, %cst {dimension_numbers = #tpu.dot_dimension_numbers<[1], [0], [0], [1], [0, 0, 1, 1], [], []>} : vector<8x32xbf16>, vector<32x128xbf16>, vector<8x128xf32> -> vector<8x128xf32>
    %c0_3 = arith.constant 0 : index
    %c0_4 = arith.constant 0 : index
    %3 = vector.load %arg3[%c0_3, %c0_4] : memref<1x128xf32, #tpu.memory_space<vmem>>, vector<1x128xf32>
    %4 = vector.broadcast %3 : vector<1x128xf32> to vector<8x128xf32>
    %5 = arith.addf %2, %4 : vector<8x128xf32>
    %cst_5 = arith.constant 0.000000e+00 : f32
    %6 = vector.broadcast %cst_5 : f32 to vector<8x128xf32>
    %7 = arith.maximumf %5, %6 : vector<8x128xf32>
    %8 = arith.truncf %7 : vector<8x128xf32> to vector<8x128xbf16>
    %c0_6 = arith.constant 0 : index
    %c0_7 = arith.constant 0 : index
    %9 = vector.load %arg4[%c0_6, %c0_7] : memref<128x128xbf16, #tpu.memory_space<vmem>>, vector<128x128xbf16>
    %cst_8 = arith.constant dense<0.000000e+00> : vector<8x128xf32>
    %10 = tpu.matmul %8, %9, %cst_8 {dimension_numbers = #tpu.dot_dimension_numbers<[1], [0], [0], [1], [0, 0, 1, 1], [], []>} : vector<8x128xbf16>, vector<128x128xbf16>, vector<8x128xf32> -> vector<8x128xf32>
    %c0_9 = arith.constant 0 : index
    %c0_10 = arith.constant 0 : index
    %11 = vector.load %arg5[%c0_9, %c0_10] : memref<1x128xf32, #tpu.memory_space<vmem>>, vector<1x128xf32>
    %12 = vector.broadcast %11 : vector<1x128xf32> to vector<8x128xf32>
    %13 = arith.addf %10, %12 : vector<8x128xf32>
    %cst_11 = arith.constant 0.000000e+00 : f32
    %14 = vector.broadcast %cst_11 : f32 to vector<8x128xf32>
    %15 = arith.maximumf %13, %14 : vector<8x128xf32>
    %16 = arith.truncf %15 : vector<8x128xf32> to vector<8x128xbf16>
    %c0_12 = arith.constant 0 : index
    %c0_13 = arith.constant 0 : index
    %17 = vector.load %arg6[%c0_12, %c0_13] : memref<128x8xbf16, #tpu.memory_space<vmem>>, vector<128x8xbf16>
    %cst_14 = arith.constant dense<0.000000e+00> : vector<8x8xf32>
    %18 = tpu.matmul %16, %17, %cst_14 {dimension_numbers = #tpu.dot_dimension_numbers<[1], [0], [0], [1], [0, 0, 1, 1], [], []>} : vector<8x128xbf16>, vector<128x8xbf16>, vector<8x8xf32> -> vector<8x8xf32>
    %c0_15 = arith.constant 0 : index
    %c0_16 = arith.constant 0 : index
    %19 = vector.load %arg7[%c0_15, %c0_16] : memref<1x8xf32, #tpu.memory_space<vmem>>, vector<1x8xf32>
    %20 = vector.broadcast %19 : vector<1x8xf32> to vector<8x8xf32>
    %21 = arith.addf %18, %20 : vector<8x8xf32>
    %c0_17 = arith.constant 0 : index
    %c0_18 = arith.constant 0 : index
    %22 = vector.load %arg8[%c0_17, %c0_18] : memref<8x8xf32, #tpu.memory_space<vmem>>, vector<8x8xf32>
    tpu.vector_store %arg8[%c0_17, %c0_18], %21 {strides = array<i32>} : memref<8x8xf32, #tpu.memory_space<vmem>>, vector<8x8xf32>,
    return
  }
  func.func @transform_0(%arg0: i32) -> (i32, i32) {
    %c0_i32 = arith.constant 0 : i32
    %c0_i32_0 = arith.constant 0 : i32
    return %arg0, %c0_i32 : i32, i32
  }
  func.func @transform_1(%arg0: i32) -> (i32, i32) {
    %c0_i32 = arith.constant 0 : i32
    %c0_i32_0 = arith.constant 0 : i32
    %c0_i32_1 = arith.constant 0 : i32
    return %c0_i32, %c0_i32_0 : i32, i32
  }
  func.func @transform_2(%arg0: i32) -> (i32, i32) {
    %c0_i32 = arith.constant 0 : i32
    %c0_i32_0 = arith.constant 0 : i32
    %c0_i32_1 = arith.constant 0 : i32
    return %c0_i32, %c0_i32_0 : i32, i32
  }
  func.func @transform_3(%arg0: i32) -> (i32, i32) {
    %c0_i32 = arith.constant 0 : i32
    %c0_i32_0 = arith.constant 0 : i32
    %c0_i32_1 = arith.constant 0 : i32
    return %c0_i32, %c0_i32_0 : i32, i32
  }
  func.func @transform_4(%arg0: i32) -> (i32, i32) {
    %c0_i32 = arith.constant 0 : i32
    %c0_i32_0 = arith.constant 0 : i32
    %c0_i32_1 = arith.constant 0 : i32
    return %c0_i32, %c0_i32_0 : i32, i32
  }
  func.func @transform_5(%arg0: i32) -> (i32, i32) {
    %c0_i32 = arith.constant 0 : i32
    %c0_i32_0 = arith.constant 0 : i32
    %c0_i32_1 = arith.constant 0 : i32
    return %c0_i32, %c0_i32_0 : i32, i32
  }
  func.func @transform_6(%arg0: i32) -> (i32, i32) {
    %c0_i32 = arith.constant 0 : i32
    %c0_i32_0 = arith.constant 0 : i32
    %c0_i32_1 = arith.constant 0 : i32
    return %c0_i32, %c0_i32_0 : i32, i32
  }
  func.func @transform_7(%arg0: i32) -> (i32, i32) {
    %c0_i32 = arith.constant 0 : i32
    %c0_i32_0 = arith.constant 0 : i32
    return %arg0, %c0_i32 : i32, i32
  }
}

</mosaic_0001>

<llo_original>
// kernel: tpu_custom_call.1
$region0: #{tpu_custom_call.1}
  #allocation0 [shape = 'u32[]', space=smem, size = 0x4, offset = 0x4, fixed_abs, tag = 'smem constant byte address 0x4 - core index']
  #allocation1 [shape = 'u32[144,128]{1,0:T(1,128)}', space=vmem, size = 0x12000, scoped, tag = 'internal scratch']
  %s0 = inlined_call_operand.vmem [shape: bf16[8,32], index: 0, kind: input, shape index: {}]
  %s1 = inlined_call_operand.hbm [shape: bf16[32,128], index: 1, kind: input, shape index: {}]
  %s2 = inlined_call_operand.vmem [shape: f32[1,128], index: 2, kind: input, shape index: {}]
  %s3 = inlined_call_operand.vmem [shape: bf16[128,128], index: 3, kind: input, shape index: {}]
  %s4 = inlined_call_operand.vmem [shape: f32[1,128], index: 4, kind: input, shape index: {}]
  %s5 = inlined_call_operand.vmem [shape: bf16[128,8], index: 5, kind: input, shape index: {}]
  %s6 = inlined_call_operand.vmem [shape: f32[1,8], index: 6, kind: input, shape index: {}]
  %s7 = inlined_call_operand.hbm [shape: f32[8,8], index: 7, kind: output, shape index: {}]
  %s8 = sld [smem:[#allocation0]]
  $region42: #{tpu_custom_call.1} parent=0
    _
  %s10 = ssub.s32 1, %s8
  %s11 = scalar_select 0, %s10, %s8
  $region1: #{tpu_custom_call.1} parent=0
    #allocation2 [shape = 'u8[8192]{0}', space=vmem, size = 0x2000, scoped, tag = 'input window, operand 1, single buffered']
    #allocation3 [shape = 's32[1]{0}', space=sflag, size = 0x4, scoped, tag = 'scoped memory for tpu_custom_call.1']
    #allocation4 [shape = 's32[1]{0}', space=sflag, size = 0x4, scoped, tag = 'scoped memory for tpu_custom_call.1']
    #allocation5 [shape = 'u8[4096]{0}', space=vmem, size = 0x1000, scoped, tag = 'output window, operand 0, single buffered']
    %12 = vsyncpa [#allocation3], 0
    %13 = vsyncpa [#allocation4], 0
    // Predicated region
    $region2: #{tpu_custom_call.1} parent=1 // pred_check
      _
    $region3: #{tpu_custom_call.1} parent=1 // pred_check_branch
      %15 = sbr.rel (0) target = $region5
    $region4: #{tpu_custom_call.1} parent=1 // pred_region
      _
    $region5: #{tpu_custom_call.1} parent=1 // pred_fallthru
      _
    // Predicated region
    $region6: #{tpu_custom_call.1} parent=1 // pred_check
      _
    $region7: #{tpu_custom_call.1} parent=1 // pred_check_branch
      %17 = sbr.rel (0) target = $region9
    $region8: #{tpu_custom_call.1} parent=1 // pred_region
      %s19 = ssub.s32 256, 256
      %20 = vsyncadd [#allocation3], %s19
      %s21 = sshll.u32 [#allocation2], 4
      %s22 = int_to_ptr.vmem [resolvable:$true] %s21
      %27 = dma.hbm_to_vmem [thread:$0]  %s1, 256, %s22, [#allocation3], 64, 64, 4
    $region9: #{tpu_custom_call.1} parent=1 // pred_fallthru
      _
    // Predicated region
    $region10: #{tpu_custom_call.1} parent=1 // pred_check
      _
    $region11: #{tpu_custom_call.1} parent=1 // pred_check_branch
      %29 = sbr.rel (0) target = $region13
    $region12: #{tpu_custom_call.1} parent=1 // pred_region
      _
    $region13: #{tpu_custom_call.1} parent=1 // pred_fallthru
      _
    // Predicated region
    $region14: #{tpu_custom_call.1} parent=1 // pred_check
      _
    $region15: #{tpu_custom_call.1} parent=1 // pred_check_branch
      %31 = sbr.rel (0) target = $region17
    $region16: #{tpu_custom_call.1} parent=1 // pred_region
      _
    $region17: #{tpu_custom_call.1} parent=1 // pred_fallthru
      _
    // Predicated region
    $region18: #{tpu_custom_call.1} parent=1 // pred_check
      _
    $region19: #{tpu_custom_call.1} parent=1 // pred_check_branch
      %33 = sbr.rel (0) target = $region21
    $region20: #{tpu_custom_call.1} parent=1 // pred_region
      _
    $region21: #{tpu_custom_call.1} parent=1 // pred_fallthru
      _
    // Predicated region
    $region22: #{tpu_custom_call.1} parent=1 // pred_check
      _
    $region23: #{tpu_custom_call.1} parent=1 // pred_check_branch
      %35 = sbr.rel (0) target = $region25
    $region24: #{tpu_custom_call.1} parent=1 // pred_region
      _
    $region25: #{tpu_custom_call.1} parent=1 // pred_fallthru
      _
    // Predicated region
    $region26: #{tpu_custom_call.1} parent=1 // pred_check
      _
    $region27: #{tpu_custom_call.1} parent=1 // pred_check_branch
      %37 = sbr.rel (0) target = $region29
    $region28: #{tpu_custom_call.1} parent=1 // pred_region
      _
    $region29: #{tpu_custom_call.1} parent=1 // pred_fallthru
      _
    // Predicated region
    $region30: #{tpu_custom_call.1} parent=1 // pred_check
      _
    $region31: #{tpu_custom_call.1} parent=1 // pred_check_branch
      %39 = sbr.rel (0) target = $region33
    $region32: #{tpu_custom_call.1} parent=1 // pred_region
      %40 = dma.done [#allocation3], 256
    $region33: #{tpu_custom_call.1} parent=1 // pred_fallthru
      _
    %v42 = vld [vmem:[%s0] sm:$0xf]
    %v43 = vld [vmem:[#allocation2] sm:$0xf]
    %v44 = vld [vmem:[#allocation2 + $0x4] sm:$0xf]
    %v45 = vld [vmem:[#allocation2 + $0x8] sm:$0xf]
    %v46 = vld [vmem:[#allocation2 + $0xc] sm:$0xf]
    %v47 = vld [vmem:[%s2] sm:$0x1]
    %v49 = vlaneseq
    %v50 = vshrl.u32 %v49, 7
    %v51 = vsub.s32 0, %v50
    %v52 = vrot.slane %v47, %v51
    %v58 = vunpack.c.l.b16 %v43
    %v59 = vunpack.c.l.b16 %v44
    %v60 = vunpack.c.l.b16 %v45
    %v61 = vunpack.c.l.b16 %v46
    %v62 = vpack.c.b16 %v59, %v58
    %v63 = vpack.c.b16 %v61, %v60
    %vm66 = vcmask 261120
    %v68 = vsel %vm66, %v42, 0
    %70 = vmatprep.subr.bf16.mxu0 0
    %71 = vmatpush1.bf16.msra.mxu0 0
    %72 = vmatprep.subr.bf16.mxu0 0
    %73 = vmatpush1.bf16.msra.mxu0 0
    %74 = vmatprep.subr.bf16.mxu0 0
    %75 = vmatpush1.bf16.msra.mxu0 0
    %76 = vmatprep.subr.bf16.mxu0 0
    %77 = vmatpush1.bf16.msra.mxu0 0
    %78 = vmatprep.subr.bf16.mxu0 0
    %79 = vmatpush1.bf16.msra.mxu0 0
    %80 = vmatprep.subr.bf16.mxu0 0
    %81 = vmatpush1.bf16.msra.mxu0 0
    %82 = vmatprep.subr.bf16.mxu0 0
    %83 = vmatpush1.bf16.msra.mxu0 %v63
    %84 = vmatprep.subr.bf16.mxu0 0
    %85 = vmatpush1.bf16.msra.mxu0 %v62
    %86 = vmatprep.subr.bf16.mxu0 0
    %87 = vmatpush2.bf16.msra.mxu0 0
    %88 = vmatprep.subr.bf16.mxu0 0
    %89 = vmatpush2.bf16.msra.mxu0 0
    %90 = vmatprep.subr.bf16.mxu0 0
    %91 = vmatpush2.bf16.msra.mxu0 0
    %92 = vmatprep.subr.bf16.mxu0 0
    %93 = vmatpush2.bf16.msra.mxu0 0
    %94 = vmatprep.subr.bf16.mxu0 0
    %95 = vmatpush2.bf16.msra.mxu0 0
    %96 = vmatprep.subr.bf16.mxu0 0
    %97 = vmatpush2.bf16.msra.mxu0 0
    %98 = vmatprep.subr.bf16.mxu0 0
    %99 = vmatpush2.bf16.msra.mxu0 0
    %100 = vmatprep.subr.bf16.mxu0 0
    %101 = vmatpush2.bf16.msra.mxu0 0
    %102 = vmatprep.mubr.bf16.mxu0 0
    %103 = vmatmul.mubr.bf16.gmra.mxu0 %v68
    %v104 = vpop.f32.mrf.mxu0
    %v105 = vadd.f32 %v52, %v104
    %v106 = vpop.f32.mrf.mxu0
    %v107 = vpop.f32.mrf.mxu0
    %v108 = vpop.f32.mrf.mxu0
    %109 = vdwg.mxu0
    %v110 = vmax.f32 %v105, 0.0
    %v111 = vpack.c.bf16 %v110, %v110
    %v112 = vld [vmem:[%s3] sm:$0xf]
    %v113 = vld [vmem:[%s3 + $0x4] sm:$0xf]
    %v114 = vld [vmem:[%s3 + $0x8] sm:$0xf]
    %v115 = vld [vmem:[%s3 + $0xc] sm:$0xf]
    %v116 = vld [vmem:[%s3 + $0x10] sm:$0xf]
    %v117 = vld [vmem:[%s3 + $0x14] sm:$0xf]
    %v118 = vld [vmem:[%s3 + $0x18] sm:$0xf]
    %v119 = vld [vmem:[%s3 + $0x1c] sm:$0xf]
    %v120 = vld [vmem:[%s3 + $0x20] sm:$0xf]
    %v121 = vld [vmem:[%s3 + $0x24] sm:$0xf]
    %v122 = vld [vmem:[%s3 + $0x28] sm:$0xf]
    %v123 = vld [vmem:[%s3 + $0x2c] sm:$0xf]
    %v124 = vld [vmem:[%s3 + $0x30] sm:$0xf]
    %v125 = vld [vmem:[%s3 + $0x34] sm:$0xf]
    %v126 = vld [vmem:[%s3 + $0x38] sm:$0xf]
    %v127 = vld [vmem:[%s3 + $0x3c] sm:$0xf]
    %v128 = vld [vmem:[%s4] sm:$0x1]
    %v130 = vlaneseq
    %v131 = vshrl.u32 %v130, 7
    %v132 = vsub.s32 0, %v131
    %v133 = vrot.slane %v128, %v132
    %v151 = vunpack.c.l.b16 %v112
    %v152 = vunpack.c.l.b16 %v113
    %v153 = vunpack.c.l.b16 %v114
    %v154 = vunpack.c.l.b16 %v115
    %v155 = vunpack.c.l.b16 %v116
    %v156 = vunpack.c.l.b16 %v117
    %v157 = vunpack.c.l.b16 %v118
    %v158 = vunpack.c.l.b16 %v119
    %v159 = vunpack.c.l.b16 %v120
    %v160 = vunpack.c.l.b16 %v121
    %v161 = vunpack.c.l.b16 %v122
    %v162 = vunpack.c.l.b16 %v123
    %v163 = vunpack.c.l.b16 %v124
    %v164 = vunpack.c.l.b16 %v125
    %v165 = vunpack.c.l.b16 %v126
    %v166 = vunpack.c.l.b16 %v127
    %v167 = vpack.c.b16 %v152, %v151
    %v168 = vpack.c.b16 %v154, %v153
    %v169 = vpack.c.b16 %v156, %v155
    %v170 = vpack.c.b16 %v158, %v157
    %v171 = vpack.c.b16 %v160, %v159
    %v172 = vpack.c.b16 %v162, %v161
    %v173 = vpack.c.b16 %v164, %v163
    %v174 = vpack.c.b16 %v166, %v165
    %183 = vmatprep.subr.bf16.mxu0 0
    %184 = vmatpush1.bf16.msra.mxu0 %v174
    %185 = vmatprep.subr.bf16.mxu0 0
    %186 = vmatpush1.bf16.msra.mxu0 %v173
    %187 = vmatprep.subr.bf16.mxu0 0
    %188 = vmatpush1.bf16.msra.mxu0 %v172
    %189 = vmatprep.subr.bf16.mxu0 0
    %190 = vmatpush1.bf16.msra.mxu0 %v171
    %191 = vmatprep.subr.bf16.mxu0 0
    %192 = vmatpush1.bf16.msra.mxu0 %v170
    %193 = vmatprep.subr.bf16.mxu0 0
    %194 = vmatpush1.bf16.msra.mxu0 %v169
    %195 = vmatprep.subr.bf16.mxu0 0
    %196 = vmatpush1.bf16.msra.mxu0 %v168
    %197 = vmatprep.subr.bf16.mxu0 0
    %198 = vmatpush1.bf16.msra.mxu0 %v167
    %199 = vmatprep.subr.bf16.mxu0 0
    %200 = vmatpush2.bf16.msra.mxu0 0
    %201 = vmatprep.subr.bf16.mxu0 0
    %202 = vmatpush2.bf16.msra.mxu0 0
    %203 = vmatprep.subr.bf16.mxu0 0
    %204 = vmatpush2.bf16.msra.mxu0 0
    %205 = vmatprep.subr.bf16.mxu0 0
    %206 = vmatpush2.bf16.msra.mxu0 0
    %207 = vmatprep.subr.bf16.mxu0 0
    %208 = vmatpush2.bf16.msra.mxu0 0
    %209 = vmatprep.subr.bf16.mxu0 0
    %210 = vmatpush2.bf16.msra.mxu0 0
    %211 = vmatprep.subr.bf16.mxu0 0
    %212 = vmatpush2.bf16.msra.mxu0 0
    %213 = vmatprep.subr.bf16.mxu0 0
    %214 = vmatpush2.bf16.msra.mxu0 0
    %215 = vmatprep.mubr.bf16.mxu0 0
    %216 = vmatmul.mubr.bf16.gmra.mxu0 %v111
    %v217 = vpop.f32.mrf.mxu0
    %v218 = vadd.f32 %v133, %v217
    %v219 = vpop.f32.mrf.mxu0
    %v220 = vpop.f32.mrf.mxu0
    %v221 = vpop.f32.mrf.mxu0
    %222 = vdwg.mxu0
    %v223 = vmax.f32 %v218, 0.0
    %v224 = vpack.c.bf16 %v223, %v223
    %v225 = vld [vmem:[%s5] sm:$0xf]
    %v226 = vld [vmem:[%s5 + $0x4] sm:$0xf]
    %v227 = vld [vmem:[%s5 + $0x8] sm:$0xf]
    %v228 = vld [vmem:[%s5 + $0xc] sm:$0xf]
    %v229 = vld [vmem:[%s5 + $0x10] sm:$0xf]
    %v230 = vld [vmem:[%s5 + $0x14] sm:$0xf]
    %v231 = vld [vmem:[%s5 + $0x18] sm:$0xf]
    %v232 = vld [vmem:[%s5 + $0x1c] sm:$0xf]
    %v233 = vld [vmem:[%s5 + $0x20] sm:$0xf]
    %v234 = vld [vmem:[%s5 + $0x24] sm:$0xf]
    %v235 = vld [vmem:[%s5 + $0x28] sm:$0xf]
    %v236 = vld [vmem:[%s5 + $0x2c] sm:$0xf]
    %v237 = vld [vmem:[%s5 + $0x30] sm:$0xf]
    %v238 = vld [vmem:[%s5 + $0x34] sm:$0xf]
    %v239 = vld [vmem:[%s5 + $0x38] sm:$0xf]
    %v240 = vld [vmem:[%s5 + $0x3c] sm:$0xf]
    %v241 = vld [vmem:[%s6] sm:$0x1]
    %v243 = vlaneseq
    %v244 = vshrl.u32 %v243, 7
    %v245 = vsub.s32 0, %v244
    %v246 = vrot.slane %v241, %v245
    %v264 = vunpack.c.l.b16 %v225
    %v265 = vunpack.c.l.b16 %v226
    %v266 = vunpack.c.l.b16 %v227
    %v267 = vunpack.c.l.b16 %v228
    %v268 = vunpack.c.l.b16 %v229
    %v269 = vunpack.c.l.b16 %v230
    %v270 = vunpack.c.l.b16 %v231
    %v271 = vunpack.c.l.b16 %v232
    %v272 = vunpack.c.l.b16 %v233
    %v273 = vunpack.c.l.b16 %v234
    %v274 = vunpack.c.l.b16 %v235
    %v275 = vunpack.c.l.b16 %v236
    %v276 = vunpack.c.l.b16 %v237
    %v277 = vunpack.c.l.b16 %v238
    %v278 = vunpack.c.l.b16 %v239
    %v279 = vunpack.c.l.b16 %v240
    %v280 = vpack.c.b16 %v265, %v264
    %v281 = vpack.c.b16 %v267, %v266
    %v282 = vpack.c.b16 %v269, %v268
    %v283 = vpack.c.b16 %v271, %v270
    %v284 = vpack.c.b16 %v273, %v272
    %v285 = vpack.c.b16 %v275, %v274
    %v286 = vpack.c.b16 %v277, %v276
    %v287 = vpack.c.b16 %v279, %v278
    %296 = vmatprep.subr.bf16.mxu0 0
    %297 = vmatpush1.bf16.msra.mxu0 %v287
    %298 = vmatprep.subr.bf16.mxu0 0
    %299 = vmatpush1.bf16.msra.mxu0 %v286
    %300 = vmatprep.subr.bf16.mxu0 0
    %301 = vmatpush1.bf16.msra.mxu0 %v285
    %302 = vmatprep.subr.bf16.mxu0 0
    %303 = vmatpush1.bf16.msra.mxu0 %v284
    %304 = vmatprep.subr.bf16.mxu0 0
    %305 = vmatpush1.bf16.msra.mxu0 %v283
    %306 = vmatprep.subr.bf16.mxu0 0
    %307 = vmatpush1.bf16.msra.mxu0 %v282
    %308 = vmatprep.subr.bf16.mxu0 0
    %309 = vmatpush1.bf16.msra.mxu0 %v281
    %310 = vmatprep.subr.bf16.mxu0 0
    %311 = vmatpush1.bf16.msra.mxu0 %v280
    %312 = vmatprep.subr.bf16.mxu0 0
    %313 = vmatpush2.bf16.msra.mxu0 0
    %314 = vmatprep.subr.bf16.mxu0 0
    %315 = vmatpush2.bf16.msra.mxu0 0
    %316 = vmatprep.subr.bf16.mxu0 0
    %317 = vmatpush2.bf16.msra.mxu0 0
    %318 = vmatprep.subr.bf16.mxu0 0
    %319 = vmatpush2.bf16.msra.mxu0 0
    %320 = vmatprep.subr.bf16.mxu0 0
    %321 = vmatpush2.bf16.msra.mxu0 0
    %322 = vmatprep.subr.bf16.mxu0 0
    %323 = vmatpush2.bf16.msra.mxu0 0
    %324 = vmatprep.subr.bf16.mxu0 0
    %325 = vmatpush2.bf16.msra.mxu0 0
    %326 = vmatprep.subr.bf16.mxu0 0
    %327 = vmatpush2.bf16.msra.mxu0 0
    %328 = vmatprep.mubr.bf16.mxu0 0
    %329 = vmatmul.mubr.bf16.gmra.mxu0 %v224
    %v330 = vpop.f32.mrf.mxu0
    %v331 = vadd.f32 %v246, %v330
    %v332 = vpop.f32.mrf.mxu0
    %v333 = vpop.f32.mrf.mxu0
    %v334 = vpop.f32.mrf.mxu0
    %335 = vdwg.mxu0
    %vm336 = vcmask 64512
    %337 = vst.msk [vmem:[#allocation5] sm:$0xff] %vm336, %v331
    // Predicated region
    $region34: #{tpu_custom_call.1} parent=1 // pred_check
      _
    $region35: #{tpu_custom_call.1} parent=1 // pred_check_branch
      %339 = sbr.rel (0) target = $region37
    $region36: #{tpu_custom_call.1} parent=1 // pred_region
      %s341 = ssub.s32 128, 128
      %342 = vsyncadd [#allocation4], %s341
      %s344 = sshll.u32 [#allocation5], 4
      %s345 = int_to_ptr.vmem [resolvable:$true] %s344
      %347 = dma.vmem_to_hbm [thread:$0]  %s345, 128, %s7, [#allocation4]
    $region37: #{tpu_custom_call.1} parent=1 // pred_fallthru
      _
    // Predicated region
    $region38: #{tpu_custom_call.1} parent=1 // pred_check
      _
    $region39: #{tpu_custom_call.1} parent=1 // pred_check_branch
      %349 = sbr.rel (0) target = $region41
    $region40: #{tpu_custom_call.1} parent=1 // pred_region
      %350 = dma.done [#allocation4], 128
    $region41: #{tpu_custom_call.1} parent=1 // pred_fallthru
      _
    %351 = vsyncpa [#allocation3], 1
    %352 = vsyncpa [#allocation4], 1

</llo_original>
